<compile_context>
chip_gen: v7x
topology: tpu7x:2x2x1
jax: 0.10.0
libtpu: 0.0.40
codegen_flags: <defaults>
</compile_context>

<pallas_src>
import math

import jax
import jax.numpy as jnp
from jax.experimental import pallas as pl
from jax.experimental.pallas import tpu as pltpu

_LANE = 128


def _round_up(n, m):
    return ((n + m - 1) // m) * m


def _padded_bytes(shape, dtype):
    """VMEM bytes of one buffer with (sublane, lane) padding for a 2-D tile."""
    itemsize = jnp.dtype(dtype).itemsize
    sublane = {4: 8, 2: 16, 1: 32}[itemsize]
    rows, cols = (1, shape[0]) if len(shape) == 1 else (shape[-2], shape[-1])
    return _round_up(rows, sublane) * _round_up(cols, _LANE) * itemsize


def _mlp_kernel(x_ref, w1_ref, b1_ref, w2_ref, b2_ref, w3_ref, b3_ref, o_ref):
    """Transposed MLP: everything has the batch tile on the lane axis."""
    x_t = x_ref[...]                                            # (in_f, tb) bf16

    # h1^T = W1 @ x^T + b1   -> (hid, tb), f32 MXU accumulation.
    h1 = jnp.dot(w1_ref[...], x_t,
                 preferred_element_type=jnp.float32) + b1_ref[...]
    h1 = jnp.maximum(h1, 0.0)                                   # ReLU (f32 VPU)

    # h2^T = W2 @ h1^T + b2  -> (hid, tb)
    h2 = jnp.dot(w2_ref[...], h1.astype(jnp.bfloat16),
                 preferred_element_type=jnp.float32) + b2_ref[...]
    h2 = jnp.maximum(h2, 0.0)

    # y^T = W3 @ h2^T + b3   -> (out_f, tb); lane-dense 128-wide stores.
    out = jnp.dot(w3_ref[...], h2.astype(jnp.bfloat16),
                  preferred_element_type=jnp.float32) + b3_ref[...]
    o_ref[...] = out.astype(o_ref.dtype)


def linear_qnet_forward(x, kparams, *, tile_b=2048):
    """Forward pass.

    x: (B, input_size) f32.
    kparams: output of prepare_kernel_params (bf16 weights in PyTorch-native
             (out_features, in_features) layout, f32 biases shaped (out, 1)).
    Returns (B, output_size) f32.
    """
    w1, b1 = kparams["w1"], kparams["b1"]
    w2, b2 = kparams["w2"], kparams["b2"]
    w3, b3 = kparams["w3"], kparams["b3"]

    B, in_f = x.shape
    hid = w1.shape[0]
    out_f = w3.shape[0]

    # --- batch tiling (lane axis) ------------------------------------------
    B_lane = _round_up(max(B, 1), _LANE)
    n_tiles = max(1, pl.cdiv(B_lane, max(_LANE, tile_b)))
    if B_lane >= 2 * _LANE:
        # Give v7x's two TensorCores at least two grid steps to split
        # (harmless on single-TC v5e/v6e).
        n_tiles = max(2, n_tiles)
    tb = _round_up(pl.cdiv(B_lane, n_tiles), _LANE)
    B_pad = tb * n_tiles

    # Transpose + bf16 cast + zero-pad of x in one fused XLA expression
    # (the kernel then reads a dense (in_f, tb) bf16 tile per grid step).
    x_t = jnp.pad(x.T.astype(jnp.bfloat16), ((0, 0), (0, B_pad - B)))

    # --- VMEM budget (lane/sublane-padded, double-buffered) ----------------
    tile_bytes = (
        2 * _padded_bytes((in_f, tb), jnp.bfloat16)        # x tile, 2 bufs
        + 2 * _padded_bytes((out_f, tb), jnp.float32)      # out tile, 2 bufs
        + 2 * sum(_padded_bytes(a.shape, a.dtype)          # resident params
                  for a in (w1, b1, w2, b2, w3, b3))
        + 2 * _padded_bytes((hid, tb), jnp.float32)        # h1, h2 (f32)
        + 2 * _padded_bytes((hid, tb), jnp.bfloat16)       # bf16 copies for MXU
    )
    vmem_limit = min(32 * 1024 * 1024, max(4 * 1024 * 1024, 2 * tile_bytes))

    def resident(a):
        # Constant block index -> stays VMEM-resident across all grid steps.
        return pl.BlockSpec(a.shape, lambda i: (0, 0))

    out_t = pl.pallas_call(
        _mlp_kernel,
        out_shape=jax.ShapeDtypeStruct((out_f, B_pad), jnp.float32),
        grid=(n_tiles,),
        in_specs=[
            pl.BlockSpec((in_f, tb), lambda i: (0, i)),    # x^T batch tile
            resident(w1), resident(b1),
            resident(w2), resident(b2),
            resident(w3), resident(b3),
        ],
        out_specs=pl.BlockSpec((out_f, tb), lambda i: (0, i)),
        compiler_params=pltpu.CompilerParams(
            dimension_semantics=("parallel",),             # megacore split (v7x)
            vmem_limit_bytes=vmem_limit,
        ),
    )(x_t, w1, b1, w2, b2, w3, b3)

    return out_t[:, :B].T


def init_params(key, input_size, hidden_size, output_size):
    """PyTorch-style init, PyTorch-native layout: W (out, in), b (out,)."""
    ks = jax.random.split(key, 6)

    def layer(kw, kb, fan_in, fan_out):
        bound = 1.0 / math.sqrt(float(fan_in))
        w = jax.random.uniform(kw, (fan_out, fan_in), jnp.float32, -bound, bound)
        b = jax.random.uniform(kb, (fan_out,), jnp.float32, -bound, bound)
        return w, b

    w1, b1 = layer(ks[0], ks[1], input_size, hidden_size)
    w2, b2 = layer(ks[2], ks[3], hidden_size, hidden_size)
    w3, b3 = layer(ks[4], ks[5], hidden_size, output_size)
    return {"w1": w1, "b1": b1, "w2": w2, "b2": b2, "w3": w3, "b3": b3}


def prepare_kernel_params(params):
    """One-time conversion: bf16 weights (out,in), f32 biases (out,1)."""
    out = {}
    for i in (1, 2, 3):
        out[f"w{i}"] = params[f"w{i}"].astype(jnp.bfloat16)
        out[f"b{i}"] = params[f"b{i}"].reshape(-1, 1).astype(jnp.float32)
    return out


def _reference(x, params):
    """Pure-JAX reference with the same bf16-operand / f32-accumulate math."""
    bf = jnp.bfloat16

    def lin(h, w, b):
        return jnp.dot(h.astype(bf), w.T.astype(bf),
                       preferred_element_type=jnp.float32) + b

    h = jnp.maximum(lin(x, params["w1"], params["b1"]), 0.0)
    h = jnp.maximum(lin(h, params["w2"], params["b2"]), 0.0)
    return lin(h, params["w3"], params["b3"])


if __name__ == "__main__":
    # Typical snake-game Q-net sizes, kept small.
    batch, input_size, hidden_size, output_size = 2, 16, 32, 8

    key = jax.random.PRNGKey(0)
    kx, kp = jax.random.split(key)
    x = jax.random.normal(kx, (batch, input_size), jnp.float32)

    params = init_params(kp, input_size, hidden_size, output_size)
    kparams = prepare_kernel_params(params)   # cast weights once, outside fwd

    fwd = jax.jit(lambda xx: linear_qnet_forward(xx, kparams))
    out = jax.block_until_ready(fwd(x))

    ref = _reference(x, params)
    assert out.shape == (batch, output_size)
    max_err = jnp.max(jnp.abs(out - ref))
    assert jnp.allclose(out, ref, atol=1e-2, rtol=1e-2), f"max abs err {max_err}"

    print("KERNEL_OK")
</pallas_src>

<mosaic_0001>
module attributes {stable_mosaic.version = 11 : i64} {
  func.func @_mlp_kernel(%arg0: i32, %arg1: memref<16x128xbf16, #tpu.memory_space<vmem>>, %arg2: memref<32x16xbf16, #tpu.memory_space<vmem>>, %arg3: memref<32x1xf32, #tpu.memory_space<vmem>>, %arg4: memref<32x32xbf16, #tpu.memory_space<vmem>>, %arg5: memref<32x1xf32, #tpu.memory_space<vmem>>, %arg6: memref<8x32xbf16, #tpu.memory_space<vmem>>, %arg7: memref<8x1xf32, #tpu.memory_space<vmem>>, %arg8: memref<8x128xf32, #tpu.memory_space<vmem>>) attributes {dimension_semantics = [#tpu.dimension_semantics<parallel>], iteration_bounds = array<i64: 1>, scalar_prefetch = 0 : i64, scratch_operands = 0 : i64, tpu.core_type = #tpu.core_type<tc>, window_params = [{transform_indices = @transform_0, window_bounds = array<i64: 16, 128>}, {pipeline_mode = #tpu.pipeline_mode<synchronous>, transform_indices = @transform_1, window_bounds = array<i64: 32, 16>}, {pipeline_mode = #tpu.pipeline_mode<synchronous>, transform_indices = @transform_2, window_bounds = array<i64: 32, 1>}, {pipeline_mode = #tpu.pipeline_mode<synchronous>, transform_indices = @transform_3, window_bounds = array<i64: 32, 32>}, {pipeline_mode = #tpu.pipeline_mode<synchronous>, transform_indices = @transform_4, window_bounds = array<i64: 32, 1>}, {pipeline_mode = #tpu.pipeline_mode<synchronous>, transform_indices = @transform_5, window_bounds = array<i64: 8, 32>}, {pipeline_mode = #tpu.pipeline_mode<synchronous>, transform_indices = @transform_6, window_bounds = array<i64: 8, 1>}, {transform_indices = @transform_7, window_bounds = array<i64: 8, 128>}]} {
    %c0 = arith.constant 0 : index
    %c0_0 = arith.constant 0 : index
    %0 = vector.load %arg1[%c0, %c0_0] : memref<16x128xbf16, #tpu.memory_space<vmem>>, vector<16x128xbf16>
    %c0_1 = arith.constant 0 : index
    %c0_2 = arith.constant 0 : index
    %1 = vector.load %arg2[%c0_1, %c0_2] : memref<32x16xbf16, #tpu.memory_space<vmem>>, vector<32x16xbf16>
    %cst = arith.constant dense<0.000000e+00> : vector<32x128xf32>
    %2 = tpu.matmul %1, %0, %cst {dimension_numbers = #tpu.dot_dimension_numbers<[1], [0], [0], [1], [0, 0, 1, 1], [], []>} : vector<32x16xbf16>, vector<16x128xbf16>, vector<32x128xf32> -> vector<32x128xf32>
    %c0_3 = arith.constant 0 : index
    %c0_4 = arith.constant 0 : index
    %3 = vector.load %arg3[%c0_3, %c0_4] : memref<32x1xf32, #tpu.memory_space<vmem>>, vector<32x1xf32>
    %4 = vector.broadcast %3 : vector<32x1xf32> to vector<32x128xf32>
    %5 = arith.addf %2, %4 : vector<32x128xf32>
    %cst_5 = arith.constant 0.000000e+00 : f32
    %6 = vector.broadcast %cst_5 : f32 to vector<32x128xf32>
    %7 = arith.maximumf %5, %6 : vector<32x128xf32>
    %c0_6 = arith.constant 0 : index
    %c0_7 = arith.constant 0 : index
    %8 = vector.load %arg4[%c0_6, %c0_7] : memref<32x32xbf16, #tpu.memory_space<vmem>>, vector<32x32xbf16>
    %9 = arith.truncf %7 : vector<32x128xf32> to vector<32x128xbf16>
    %cst_8 = arith.constant dense<0.000000e+00> : vector<32x128xf32>
    %10 = tpu.matmul %8, %9, %cst_8 {dimension_numbers = #tpu.dot_dimension_numbers<[1], [0], [0], [1], [0, 0, 1, 1], [], []>} : vector<32x32xbf16>, vector<32x128xbf16>, vector<32x128xf32> -> vector<32x128xf32>
    %c0_9 = arith.constant 0 : index
    %c0_10 = arith.constant 0 : index
    %11 = vector.load %arg5[%c0_9, %c0_10] : memref<32x1xf32, #tpu.memory_space<vmem>>, vector<32x1xf32>
    %12 = vector.broadcast %11 : vector<32x1xf32> to vector<32x128xf32>
    %13 = arith.addf %10, %12 : vector<32x128xf32>
    %cst_11 = arith.constant 0.000000e+00 : f32
    %14 = vector.broadcast %cst_11 : f32 to vector<32x128xf32>
    %15 = arith.maximumf %13, %14 : vector<32x128xf32>
    %c0_12 = arith.constant 0 : index
    %c0_13 = arith.constant 0 : index
    %16 = vector.load %arg6[%c0_12, %c0_13] : memref<8x32xbf16, #tpu.memory_space<vmem>>, vector<8x32xbf16>
    %17 = arith.truncf %15 : vector<32x128xf32> to vector<32x128xbf16>
    %cst_14 = arith.constant dense<0.000000e+00> : vector<8x128xf32>
    %18 = tpu.matmul %16, %17, %cst_14 {dimension_numbers = #tpu.dot_dimension_numbers<[1], [0], [0], [1], [0, 0, 1, 1], [], []>} : vector<8x32xbf16>, vector<32x128xbf16>, vector<8x128xf32> -> vector<8x128xf32>
    %c0_15 = arith.constant 0 : index
    %c0_16 = arith.constant 0 : index
    %19 = vector.load %arg7[%c0_15, %c0_16] : memref<8x1xf32, #tpu.memory_space<vmem>>, vector<8x1xf32>
    %20 = vector.broadcast %19 : vector<8x1xf32> to vector<8x128xf32>
    %21 = arith.addf %18, %20 : vector<8x128xf32>
    %c0_17 = arith.constant 0 : index
    %c0_18 = arith.constant 0 : index
    %22 = vector.load %arg8[%c0_17, %c0_18] : memref<8x128xf32, #tpu.memory_space<vmem>>, vector<8x128xf32>
    tpu.vector_store %arg8[%c0_17, %c0_18], %21 {strides = array<i32>} : memref<8x128xf32, #tpu.memory_space<vmem>>, vector<8x128xf32>,
    return
  }
  func.func @transform_0(%arg0: i32) -> (i32, i32) {
    %c0_i32 = arith.constant 0 : i32
    %c0_i32_0 = arith.constant 0 : i32
    return %c0_i32, %arg0 : i32, i32
  }
  func.func @transform_1(%arg0: i32) -> (i32, i32) {
    %c0_i32 = arith.constant 0 : i32
    %c0_i32_0 = arith.constant 0 : i32
    %c0_i32_1 = arith.constant 0 : i32
    return %c0_i32, %c0_i32_0 : i32, i32
  }
  func.func @transform_2(%arg0: i32) -> (i32, i32) {
    %c0_i32 = arith.constant 0 : i32
    %c0_i32_0 = arith.constant 0 : i32
    %c0_i32_1 = arith.constant 0 : i32
    return %c0_i32, %c0_i32_0 : i32, i32
  }
  func.func @transform_3(%arg0: i32) -> (i32, i32) {
    %c0_i32 = arith.constant 0 : i32
    %c0_i32_0 = arith.constant 0 : i32
    %c0_i32_1 = arith.constant 0 : i32
    return %c0_i32, %c0_i32_0 : i32, i32
  }
  func.func @transform_4(%arg0: i32) -> (i32, i32) {
    %c0_i32 = arith.constant 0 : i32
    %c0_i32_0 = arith.constant 0 : i32
    %c0_i32_1 = arith.constant 0 : i32
    return %c0_i32, %c0_i32_0 : i32, i32
  }
  func.func @transform_5(%arg0: i32) -> (i32, i32) {
    %c0_i32 = arith.constant 0 : i32
    %c0_i32_0 = arith.constant 0 : i32
    %c0_i32_1 = arith.constant 0 : i32
    return %c0_i32, %c0_i32_0 : i32, i32
  }
  func.func @transform_6(%arg0: i32) -> (i32, i32) {
    %c0_i32 = arith.constant 0 : i32
    %c0_i32_0 = arith.constant 0 : i32
    %c0_i32_1 = arith.constant 0 : i32
    return %c0_i32, %c0_i32_0 : i32, i32
  }
  func.func @transform_7(%arg0: i32) -> (i32, i32) {
    %c0_i32 = arith.constant 0 : i32
    %c0_i32_0 = arith.constant 0 : i32
    return %c0_i32, %arg0 : i32, i32
  }
}

</mosaic_0001>

<llo_original>
// kernel: _lambda_.1
$region0: #{_lambda_.1}
  #allocation0 [shape = 'u32[]', space=smem, size = 0x4, offset = 0x4, fixed_abs, tag = 'smem constant byte address 0x4 - core index']
  #allocation1 [shape = 'u32[144,128]{1,0:T(1,128)}', space=vmem, size = 0x12000, scoped, tag = 'internal scratch']
  %s0 = inlined_call_operand.vmem [shape: bf16[16,128], index: 0, kind: input, shape index: {}]
  %s1 = inlined_call_operand.hbm [shape: bf16[32,16], index: 1, kind: input, shape index: {}]
  %s2 = inlined_call_operand.hbm [shape: f32[32,1], index: 2, kind: input, shape index: {}]
  %s3 = inlined_call_operand.vmem [shape: bf16[32,32], index: 3, kind: input, shape index: {}]
  %s4 = inlined_call_operand.vmem [shape: f32[32,1], index: 4, kind: input, shape index: {}]
  %s5 = inlined_call_operand.hbm [shape: bf16[8,32], index: 5, kind: input, shape index: {}]
  %s6 = inlined_call_operand.vmem [shape: f32[8,1], index: 6, kind: input, shape index: {}]
  %s7 = inlined_call_operand.vmem [shape: f32[8,128], index: 7, kind: output, shape index: {}]
  %s8 = sld [smem:[#allocation0]]
  $region50: #{_lambda_.1} parent=0
    _
  %s10 = ssub.s32 1, %s8
  %s11 = scalar_select 0, %s10, %s8
  $region1: #{_lambda_.1} parent=0
    #allocation2 [shape = 'u8[8192]{0}', space=vmem, size = 0x2000, scoped, tag = 'input window, operand 1, single buffered']
    #allocation3 [shape = 's32[1]{0}', space=sflag, size = 0x4, scoped, tag = 'scoped memory for _lambda_.1']
    #allocation4 [shape = 'u8[16384]{0}', space=vmem, size = 0x4000, scoped, tag = 'input window, operand 2, single buffered']
    #allocation5 [shape = 's32[1]{0}', space=sflag, size = 0x4, scoped, tag = 'scoped memory for _lambda_.1']
    #allocation6 [shape = 'u8[2048]{0}', space=vmem, size = 0x800, scoped, tag = 'input window, operand 5, single buffered']
    %12 = vsyncpa [#allocation3], 0
    %13 = vsyncpa [#allocation5], 0
    // Predicated region
    $region2: #{_lambda_.1} parent=1 // pred_check
      _
    $region3: #{_lambda_.1} parent=1 // pred_check_branch
      %15 = sbr.rel (0) target = $region5
    $region4: #{_lambda_.1} parent=1 // pred_region
      _
    $region5: #{_lambda_.1} parent=1 // pred_fallthru
      _
    // Predicated region
    $region6: #{_lambda_.1} parent=1 // pred_check
      _
    $region7: #{_lambda_.1} parent=1 // pred_check_branch
      %17 = sbr.rel (0) target = $region9
    $region8: #{_lambda_.1} parent=1 // pred_region
      %s19 = ssub.s32 256, 256
      %20 = vsyncadd [#allocation3], %s19
      %s21 = sshll.u32 [#allocation2], 4
      %s22 = int_to_ptr.vmem [resolvable:$true] %s21
      %27 = dma.hbm_to_vmem [thread:$0]  %s1, 256, %s22, [#allocation3], 64, 64, 4
    $region9: #{_lambda_.1} parent=1 // pred_fallthru
      _
    // Predicated region
    $region10: #{_lambda_.1} parent=1 // pred_check
      _
    $region11: #{_lambda_.1} parent=1 // pred_check_branch
      %29 = sbr.rel (0) target = $region13
    $region12: #{_lambda_.1} parent=1 // pred_region
      %s31 = ssub.s32 512, 512
      %32 = vsyncadd [#allocation5], %s31
      %s33 = sshll.u32 [#allocation4], 4
      %s34 = int_to_ptr.vmem [resolvable:$true] %s33
      %39 = dma.hbm_to_vmem [thread:$0]  %s2, 512, %s34, [#allocation5], 128, 128, 8
    $region13: #{_lambda_.1} parent=1 // pred_fallthru
      _
    // Predicated region
    $region14: #{_lambda_.1} parent=1 // pred_check
      _
    $region15: #{_lambda_.1} parent=1 // pred_check_branch
      %41 = sbr.rel (0) target = $region17
    $region16: #{_lambda_.1} parent=1 // pred_region
      _
    $region17: #{_lambda_.1} parent=1 // pred_fallthru
      _
    // Predicated region
    $region18: #{_lambda_.1} parent=1 // pred_check
      _
    $region19: #{_lambda_.1} parent=1 // pred_check_branch
      %43 = sbr.rel (0) target = $region21
    $region20: #{_lambda_.1} parent=1 // pred_region
      _
    $region21: #{_lambda_.1} parent=1 // pred_fallthru
      _
    // Predicated region
    $region22: #{_lambda_.1} parent=1 // pred_check
      _
    $region23: #{_lambda_.1} parent=1 // pred_check_branch
      %45 = sbr.rel (0) target = $region25
    $region24: #{_lambda_.1} parent=1 // pred_region
      %s47 = ssub.s32 64, 64
      %48 = vsyncadd [#allocation5], %s47
      %s50 = sshll.u32 [#allocation6], 4
      %s51 = int_to_ptr.vmem [resolvable:$true] %s50
      %53 = dma.hbm_to_vmem [thread:$0]  %s5, 64, %s51, [#allocation5]
    $region25: #{_lambda_.1} parent=1 // pred_fallthru
      _
    // Predicated region
    $region26: #{_lambda_.1} parent=1 // pred_check
      _
    $region27: #{_lambda_.1} parent=1 // pred_check_branch
      %55 = sbr.rel (0) target = $region29
    $region28: #{_lambda_.1} parent=1 // pred_region
      _
    $region29: #{_lambda_.1} parent=1 // pred_fallthru
      _
    // Predicated region
    $region30: #{_lambda_.1} parent=1 // pred_check
      _
    $region31: #{_lambda_.1} parent=1 // pred_check_branch
      %57 = sbr.rel (0) target = $region33
    $region32: #{_lambda_.1} parent=1 // pred_region
      %58 = dma.done [#allocation3], 256
    $region33: #{_lambda_.1} parent=1 // pred_fallthru
      _
    // Predicated region
    $region34: #{_lambda_.1} parent=1 // pred_check
      _
    $region35: #{_lambda_.1} parent=1 // pred_check_branch
      %60 = sbr.rel (0) target = $region37
    $region36: #{_lambda_.1} parent=1 // pred_region
      %61 = dma.done [#allocation5], 512
    $region37: #{_lambda_.1} parent=1 // pred_fallthru
      _
    // Predicated region
    $region38: #{_lambda_.1} parent=1 // pred_check
      _
    $region39: #{_lambda_.1} parent=1 // pred_check_branch
      %63 = sbr.rel (0) target = $region41
    $region40: #{_lambda_.1} parent=1 // pred_region
      %64 = dma.done [#allocation5], 64
    $region41: #{_lambda_.1} parent=1 // pred_fallthru
      _
    %v66 = vld [vmem:[%s0] sm:$0xf]
    %v67 = vld [vmem:[%s0 + $0x4] sm:$0xf]
    %v68 = vld [vmem:[#allocation2] sm:$0xf]
    %v69 = vld [vmem:[#allocation2 + $0x4] sm:$0xf]
    %v70 = vld [vmem:[#allocation2 + $0x8] sm:$0xf]
    %v71 = vld [vmem:[#allocation2 + $0xc] sm:$0xf]
    %v72 = vld [vmem:[#allocation4] sm:$0xff]
    %v73 = vld [vmem:[#allocation4 + $0x8] sm:$0xff]
    %v74 = vld [vmem:[#allocation4 + $0x10] sm:$0xff]
    %v75 = vld [vmem:[#allocation4 + $0x18] sm:$0xff]
    %77 = vset.pattern.permute.xlu0 0
    %78 = vperm.xlu0 %77, %v72
    %v79 = vpop.permute.xlu0 %78
    %82 = vset.pattern.permute.xlu0 0
    %83 = vperm.xlu0 %82, %v73
    %v84 = vpop.permute.xlu0 %83
    %87 = vset.pattern.permute.xlu0 0
    %88 = vperm.xlu0 %87, %v74
    %v89 = vpop.permute.xlu0 %88
    %92 = vset.pattern.permute.xlu0 0
    %93 = vperm.xlu0 %92, %v75
    %v94 = vpop.permute.xlu0 %93
    %v100 = vunpack.c.l.b16 %v68
    %v101 = vunpack.c.l.b16 %v69
    %v102 = vunpack.c.l.b16 %v70
    %v103 = vunpack.c.l.b16 %v71
    %v104 = vpack.c.b16 %v101, %v100
    %v105 = vpack.c.b16 %v103, %v102
    %v108 = vunpack.c.l.b16 %v66
    %v109 = vunpack.c.l.b16 %v67
    %v110 = vpack.c.b16 %v109, %v108
    %vm112 = vcmask 130048
    %v114 = vsel %vm112, %v104, 0
    %v117 = vsel %vm112, %v105, 0
    %119 = vmatprep.subr.bf16.mxu0 0
    %120 = vmatpush1.bf16.msra.mxu0 %v110
    %121 = vmatprep.subr.bf16.mxu0 0
    %122 = vmatpush1.bf16.msra.mxu0 0
    %123 = vmatprep.subr.bf16.mxu0 0
    %124 = vmatpush1.bf16.msra.mxu0 0
    %125 = vmatprep.subr.bf16.mxu0 0
    %126 = vmatpush1.bf16.msra.mxu0 0
    %127 = vmatprep.subr.bf16.mxu0 0
    %128 = vmatpush1.bf16.msra.mxu0 0
    %129 = vmatprep.subr.bf16.mxu0 0
    %130 = vmatpush1.bf16.msra.mxu0 0
    %131 = vmatprep.subr.bf16.mxu0 0
    %132 = vmatpush1.bf16.msra.mxu0 0
    %133 = vmatprep.subr.bf16.mxu0 0
    %134 = vmatpush1.bf16.msra.mxu0 0
    %135 = vmatprep.subr.bf16.mxu0 0
    %136 = vmatpush1.bf16.msra.mxu0 0
    %137 = vmatprep.subr.bf16.mxu0 0
    %138 = vmatpush1.bf16.msra.mxu0 0
    %139 = vmatprep.subr.bf16.mxu0 0
    %140 = vmatpush1.bf16.msra.mxu0 0
    %141 = vmatprep.subr.bf16.mxu0 0
    %142 = vmatpush1.bf16.msra.mxu0 0
    %143 = vmatprep.subr.bf16.mxu0 0
    %144 = vmatpush1.bf16.msra.mxu0 0
    %145 = vmatprep.subr.bf16.mxu0 0
    %146 = vmatpush1.bf16.msra.mxu0 0
    %147 = vmatprep.subr.bf16.mxu0 0
    %148 = vmatpush1.bf16.msra.mxu0 0
    %149 = vmatprep.subr.bf16.mxu0 0
    %150 = vmatpush1.bf16.msra.mxu0 0
    %151 = vmatprep.mubr.bf16.mxu0 0
    %152 = vmatmul.mubr.bf16.gmra.mrb[0].mxu0 %v114
    %v153 = vpop.f32.mrb[0].mxu0
    %v154 = vadd.f32 %v79, %v153
    %v155 = vpop.f32.mrb[0].mxu0
    %v156 = vpop.f32.mrb[0].mxu0
    %v157 = vadd.f32 %v84, %v156
    %v158 = vpop.f32.mrb[0].mxu0
    %159 = vmatprep.mubr.bf16.mxu0 0
    %160 = vmatmul.mubr.bf16.gmra.mrb[0].mxu0 %v117
    %v161 = vpop.f32.mrb[0].mxu0
    %v162 = vadd.f32 %v89, %v161
    %v163 = vpop.f32.mrb[0].mxu0
    %v164 = vpop.f32.mrb[0].mxu0
    %v165 = vadd.f32 %v94, %v164
    %v166 = vpop.f32.mrb[0].mxu0
    %167 = vdwg.mxu0
    %v168 = vmax.f32 %v154, 0.0
    %v169 = vmax.f32 %v157, 0.0
    %v170 = vmax.f32 %v162, 0.0
    %v171 = vmax.f32 %v165, 0.0
    %v172 = vld [vmem:[%s3] sm:$0xf]
    %v173 = vld [vmem:[%s3 + $0x4] sm:$0xf]
    %v174 = vld [vmem:[%s3 + $0x8] sm:$0xf]
    %v175 = vld [vmem:[%s3 + $0xc] sm:$0xf]
    %v176 = vpack.c.bf16 %v169, %v168
    %v177 = vpack.c.bf16 %v171, %v170
    %v178 = vld [vmem:[%s4] sm:$0xff]
    %v179 = vld [vmem:[%s4 + $0x8] sm:$0xff]
    %v180 = vld [vmem:[%s4 + $0x10] sm:$0xff]
    %v181 = vld [vmem:[%s4 + $0x18] sm:$0xff]
    %183 = vset.pattern.permute.xlu0 0
    %184 = vperm.xlu0 %183, %v178
    %v185 = vpop.permute.xlu0 %184
    %188 = vset.pattern.permute.xlu0 0
    %189 = vperm.xlu0 %188, %v179
    %v190 = vpop.permute.xlu0 %189
    %193 = vset.pattern.permute.xlu0 0
    %194 = vperm.xlu0 %193, %v180
    %v195 = vpop.permute.xlu0 %194
    %198 = vset.pattern.permute.xlu0 0
    %199 = vperm.xlu0 %198, %v181
    %v200 = vpop.permute.xlu0 %199
    %v206 = vunpack.c.l.b16 %v172
    %v207 = vunpack.c.l.b16 %v173
    %v208 = vunpack.c.l.b16 %v174
    %v209 = vunpack.c.l.b16 %v175
    %v210 = vpack.c.b16 %v207, %v206
    %v211 = vpack.c.b16 %v209, %v208
    %vm212 = vcmask 261120
    %v214 = vsel %vm212, %v210, 0
    %v217 = vsel %vm212, %v211, 0
    %219 = vmatprep.subr.bf16.mxu0 0
    %220 = vmatpush1.bf16.msra.mxu0 %v176
    %221 = vmatprep.subr.bf16.mxu0 0
    %222 = vmatpush1.bf16.msra.mxu0 %v177
    %223 = vmatprep.subr.bf16.mxu0 0
    %224 = vmatpush1.bf16.msra.mxu0 0
    %225 = vmatprep.subr.bf16.mxu0 0
    %226 = vmatpush1.bf16.msra.mxu0 0
    %227 = vmatprep.subr.bf16.mxu0 0
    %228 = vmatpush1.bf16.msra.mxu0 0
    %229 = vmatprep.subr.bf16.mxu0 0
    %230 = vmatpush1.bf16.msra.mxu0 0
    %231 = vmatprep.subr.bf16.mxu0 0
    %232 = vmatpush1.bf16.msra.mxu0 0
    %233 = vmatprep.subr.bf16.mxu0 0
    %234 = vmatpush1.bf16.msra.mxu0 0
    %235 = vmatprep.subr.bf16.mxu0 0
    %236 = vmatpush1.bf16.msra.mxu0 0
    %237 = vmatprep.subr.bf16.mxu0 0
    %238 = vmatpush1.bf16.msra.mxu0 0
    %239 = vmatprep.subr.bf16.mxu0 0
    %240 = vmatpush1.bf16.msra.mxu0 0
    %241 = vmatprep.subr.bf16.mxu0 0
    %242 = vmatpush1.bf16.msra.mxu0 0
    %243 = vmatprep.subr.bf16.mxu0 0
    %244 = vmatpush1.bf16.msra.mxu0 0
    %245 = vmatprep.subr.bf16.mxu0 0
    %246 = vmatpush1.bf16.msra.mxu0 0
    %247 = vmatprep.subr.bf16.mxu0 0
    %248 = vmatpush1.bf16.msra.mxu0 0
    %249 = vmatprep.subr.bf16.mxu0 0
    %250 = vmatpush1.bf16.msra.mxu0 0
    %251 = vmatprep.mubr.bf16.mxu0 0
    %252 = vmatmul.mubr.bf16.gmra.mrb[0].mxu0 %v214
    %v253 = vpop.f32.mrb[0].mxu0
    %v254 = vadd.f32 %v185, %v253
    %v255 = vpop.f32.mrb[0].mxu0
    %v256 = vpop.f32.mrb[0].mxu0
    %v257 = vadd.f32 %v190, %v256
    %v258 = vpop.f32.mrb[0].mxu0
    %259 = vmatprep.mubr.bf16.mxu0 0
    %260 = vmatmul.mubr.bf16.gmra.mrb[0].mxu0 %v217
    %v261 = vpop.f32.mrb[0].mxu0
    %v262 = vadd.f32 %v195, %v261
    %v263 = vpop.f32.mrb[0].mxu0
    %v264 = vpop.f32.mrb[0].mxu0
    %v265 = vadd.f32 %v200, %v264
    %v266 = vpop.f32.mrb[0].mxu0
    %267 = vdwg.mxu0
    %v268 = vmax.f32 %v254, 0.0
    %v269 = vmax.f32 %v257, 0.0
    %v270 = vmax.f32 %v262, 0.0
    %v271 = vmax.f32 %v265, 0.0
    %v272 = vld [vmem:[#allocation6] sm:$0xf]
    %v273 = vpack.c.bf16 %v269, %v268
    %v274 = vpack.c.bf16 %v271, %v270
    %v275 = vld [vmem:[%s6] sm:$0xff]
    %277 = vset.pattern.permute.xlu0 0
    %278 = vperm.xlu0 %277, %v275
    %v279 = vpop.permute.xlu0 %278
    %v282 = vsel %vm212, %v272, 0
    %284 = vmatprep.subr.bf16.mxu0 0
    %285 = vmatpush1.bf16.msra.mxu0 %v273
    %286 = vmatprep.subr.bf16.mxu0 0
    %287 = vmatpush1.bf16.msra.mxu0 %v274
    %288 = vmatprep.subr.bf16.mxu0 0
    %289 = vmatpush1.bf16.msra.mxu0 0
    %290 = vmatprep.subr.bf16.mxu0 0
    %291 = vmatpush1.bf16.msra.mxu0 0
    %292 = vmatprep.subr.bf16.mxu0 0
    %293 = vmatpush1.bf16.msra.mxu0 0
    %294 = vmatprep.subr.bf16.mxu0 0
    %295 = vmatpush1.bf16.msra.mxu0 0
    %296 = vmatprep.subr.bf16.mxu0 0
    %297 = vmatpush1.bf16.msra.mxu0 0
    %298 = vmatprep.subr.bf16.mxu0 0
    %299 = vmatpush1.bf16.msra.mxu0 0
    %300 = vmatprep.subr.bf16.mxu0 0
    %301 = vmatpush1.bf16.msra.mxu0 0
    %302 = vmatprep.subr.bf16.mxu0 0
    %303 = vmatpush1.bf16.msra.mxu0 0
    %304 = vmatprep.subr.bf16.mxu0 0
    %305 = vmatpush1.bf16.msra.mxu0 0
    %306 = vmatprep.subr.bf16.mxu0 0
    %307 = vmatpush1.bf16.msra.mxu0 0
    %308 = vmatprep.subr.bf16.mxu0 0
    %309 = vmatpush1.bf16.msra.mxu0 0
    %310 = vmatprep.subr.bf16.mxu0 0
    %311 = vmatpush1.bf16.msra.mxu0 0
    %312 = vmatprep.subr.bf16.mxu0 0
    %313 = vmatpush1.bf16.msra.mxu0 0
    %314 = vmatprep.subr.bf16.mxu0 0
    %315 = vmatpush1.bf16.msra.mxu0 0
    %316 = vmatprep.mubr.bf16.mxu0 0
    %317 = vmatmul.mubr.bf16.gmra.mrb[0].mxu0 %v282
    %v318 = vpop.f32.mrb[0].mxu0
    %v319 = vadd.f32 %v279, %v318
    %v320 = vpop.f32.mrb[0].mxu0
    %v321 = vpop.f32.mrb[0].mxu0
    %v322 = vpop.f32.mrb[0].mxu0
    %323 = vdwg.mxu0
    %324 = vst [vmem:[%s7] sm:$0xff] %v319
    // Predicated region
    $region42: #{_lambda_.1} parent=1 // pred_check
      _
    $region43: #{_lambda_.1} parent=1 // pred_check_branch
      %326 = sbr.rel (0) target = $region45
    $region44: #{_lambda_.1} parent=1 // pred_region
      _
    $region45: #{_lambda_.1} parent=1 // pred_fallthru
      _
    // Predicated region
    $region46: #{_lambda_.1} parent=1 // pred_check
      _
    $region47: #{_lambda_.1} parent=1 // pred_check_branch
      %328 = sbr.rel (0) target = $region49
    $region48: #{_lambda_.1} parent=1 // pred_region
      _
    $region49: #{_lambda_.1} parent=1 // pred_fallthru
      _
    %329 = vsyncpa [#allocation3], 1
    %330 = vsyncpa [#allocation5], 1

</llo_original>
